<compile_context>
chip_gen: v7x
topology: tpu7x:2x2x1
jax: 0.10.0
libtpu: 0.0.40
codegen_flags: <defaults>
</compile_context>

<pallas_src>
import functools

import jax
import jax.numpy as jnp
from jax.experimental import pallas as pl
from jax.experimental.pallas import tpu as pltpu


_LANES = 128
_TARGET_BLOCK_BYTES = 4 * 1024 * 1024   # ~4 MiB/block: past the ~85% roofline knee, v7x-safe
_COL_TILE = 2048                        # column tile fallback for extremely wide rows


def _log_kernel(x_ref, o_ref):
    o_ref[...] = jnp.log(x_ref[...])


def _round_up(x, m):
    return ((x + m - 1) // m) * m


def _sublanes(itemsize):
    # 8 sublanes of 32-bit; sub-32-bit dtypes pack along sublanes.
    return max(8, 32 // max(1, itemsize))


def _largest_lane_multiple_divisor(n, cap):
    """Largest divisor of n that is a multiple of 128 and <= cap (n % 128 == 0)."""
    m = n // _LANES
    cap_d = max(1, cap // _LANES)
    best = 1
    i = 1
    while i * i <= m:
        if m % i == 0:
            for d in (i, m // i):
                if d <= cap_d and d > best:
                    best = d
        i += 1
    return best * _LANES


def _pick_tiles(R, C, itemsize, tile_r, tile_c):
    sub = _sublanes(itemsize)

    # Column tile: prefer full extent (contiguous DMA; divisibility waived for
    # full-extent dims) whenever `sub` rows of the padded row fit the block budget.
    if tile_c is None:
        max_full_cols = max(_LANES, _TARGET_BLOCK_BYTES // (sub * itemsize))
        tile_c = C if _round_up(C, _LANES) <= max_full_cols else _COL_TILE

    # Row tile: fill the block budget computed on PADDED dims (lane/sublane padding
    # is what actually occupies VMEM), then ensure >=4 grid blocks when the array
    # spans more than one block so v7x megacore can shard the grid.
    if tile_r is None:
        padded_c = _round_up(tile_c, _LANES)
        rows = _TARGET_BLOCK_BYTES // max(1, padded_c * itemsize)
        rows = max(sub, (rows // sub) * sub)
        tile_r = R if R <= rows else rows
        if tile_r < R or tile_c < C:
            while tile_r > sub and pl.cdiv(R, tile_r) * pl.cdiv(C, tile_c) < 4:
                tile_r = max(sub, ((tile_r // 2) // sub) * sub)
    return tile_r, tile_c


@functools.partial(jax.jit, static_argnames=("tile_r", "tile_c"))
def pallas_log(x, *, tile_r=None, tile_c=None):
    """Elementwise natural log of a rank-2 array via a Pallas TPU kernel."""
    assert x.ndim == 2, "net_Log (Log_F32_R2) expects a rank-2 input"
    R, C = x.shape
    itemsize = x.dtype.itemsize
    sub = _sublanes(itemsize)

    # Lane-dense view (metadata-only for contiguous row-major inputs): present a
    # last dim that is a multiple of 128 so stores are unmasked and no vreg lanes
    # are wasted. Only when tiles are auto-chosen.
    xk = x
    Rk, Ck = R, C
    reshaped = False
    if tile_r is None and tile_c is None and C % _LANES != 0 and (R * C) % _LANES == 0:
        cap = max(_LANES, _TARGET_BLOCK_BYTES // (sub * itemsize))
        Ck = _largest_lane_multiple_divisor(R * C, cap)
        Rk = (R * C) // Ck
        xk = x.reshape(Rk, Ck)
        reshaped = True

    tr, tc = _pick_tiles(Rk, Ck, itemsize, tile_r, tile_c)
    grid = (pl.cdiv(Rk, tr), pl.cdiv(Ck, tc))

    # VMEM limit from the actual padded working set: 2 pipeline buffers x (in+out).
    padded_block = _round_up(tr, sub) * _round_up(tc, _LANES) * itemsize
    working = 2 * 2 * padded_block
    vmem_limit = min(64 * 1024 * 1024, max(16 * 1024 * 1024, (working * 3) // 2))

    out = pl.pallas_call(
        _log_kernel,
        out_shape=jax.ShapeDtypeStruct((Rk, Ck), x.dtype),
        grid=grid,
        in_specs=[pl.BlockSpec((tr, tc), lambda i, j: (i, j))],
        out_specs=pl.BlockSpec((tr, tc), lambda i, j: (i, j)),
        compiler_params=pltpu.CompilerParams(
            dimension_semantics=("parallel", "parallel"),
            vmem_limit_bytes=int(vmem_limit),
        ),
    )(xk)

    if reshaped:
        out = out.reshape(R, C)
    return out


if __name__ == "__main__":
    key = jax.random.PRNGKey(0)
    k1, k2, k3 = jax.random.split(key, 3)

    # Rank-2 f32 input (strictly positive so log is well-defined).
    # C=32 exercises the lane-dense reshape path: (8,32) -> (1,256) view.
    x = jax.random.uniform(k1, (8, 32), dtype=jnp.float32, minval=0.1, maxval=4.0)
    y = pallas_log(x)
    jax.block_until_ready(y)
    assert y.shape == x.shape and y.dtype == x.dtype
    assert jnp.allclose(y, jnp.log(x), atol=1e-6, rtol=1e-6), "mismatch vs jnp.log reference"

    # Non-tile-aligned shape where R*C % 128 != 0: ragged multi-block path
    # (masked tail store discards the OOB garbage/NaN padding).
    x2 = jax.random.uniform(k2, (13, 200), dtype=jnp.float32, minval=0.1, maxval=4.0)
    y2 = pallas_log(x2, tile_r=8, tile_c=128)
    jax.block_until_ready(y2)
    assert y2.shape == x2.shape and y2.dtype == x2.dtype
    assert jnp.allclose(y2, jnp.log(x2), atol=1e-6, rtol=1e-6), "mismatch on ragged-grid path"

    # Lane-aligned shape hitting the auto-tiling (full-C, single contiguous block).
    x3 = jax.random.uniform(k3, (16, 256), dtype=jnp.float32, minval=0.1, maxval=4.0)
    y3 = pallas_log(x3)
    jax.block_until_ready(y3)
    assert jnp.allclose(y3, jnp.log(x3), atol=1e-6, rtol=1e-6), "mismatch on aligned path"

    print("KERNEL_OK")
</pallas_src>

<mosaic_0001>
module attributes {stable_mosaic.version = 11 : i64} {
  func.func @_log_kernel(%arg0: i32, %arg1: i32, %arg2: memref<1x256xf32, #tpu.memory_space<vmem>>, %arg3: memref<1x256xf32, #tpu.memory_space<vmem>>) attributes {dimension_semantics = [#tpu.dimension_semantics<parallel>, #tpu.dimension_semantics<parallel>], iteration_bounds = array<i64: 1, 1>, scalar_prefetch = 0 : i64, scratch_operands = 0 : i64, tpu.core_type = #tpu.core_type<tc>, window_params = [{transform_indices = @transform_0, window_bounds = array<i64: 1, 256>}, {transform_indices = @transform_1, window_bounds = array<i64: 1, 256>}]} {
    %c0 = arith.constant 0 : index
    %c0_0 = arith.constant 0 : index
    %0 = vector.load %arg2[%c0, %c0_0] : memref<1x256xf32, #tpu.memory_space<vmem>>, vector<1x256xf32>
    %1 = math.log %0 : vector<1x256xf32>
    %c0_1 = arith.constant 0 : index
    %c0_2 = arith.constant 0 : index
    %2 = vector.load %arg3[%c0_1, %c0_2] : memref<1x256xf32, #tpu.memory_space<vmem>>, vector<1x256xf32>
    tpu.vector_store %arg3[%c0_1, %c0_2], %1 {strides = array<i32>} : memref<1x256xf32, #tpu.memory_space<vmem>>, vector<1x256xf32>,
    return
  }
  func.func @transform_0(%arg0: i32, %arg1: i32) -> (i32, i32) {
    %c0_i32 = arith.constant 0 : i32
    return %arg0, %arg1 : i32, i32
  }
  func.func @transform_1(%arg0: i32, %arg1: i32) -> (i32, i32) {
    %c0_i32 = arith.constant 0 : i32
    return %arg0, %arg1 : i32, i32
  }
}

</mosaic_0001>

<llo_original>
// kernel: pallas_log.1
$region0: #{pallas_log.1}
  #allocation0 [shape = 'u32[]', space=smem, size = 0x4, offset = 0x4, fixed_abs, tag = 'smem constant byte address 0x4 - core index']
  #allocation1 [shape = 'u32[144,128]{1,0:T(1,128)}', space=vmem, size = 0x12000, scoped, tag = 'internal scratch']
  %s0 = inlined_call_operand.vmem [shape: f32[1,256], index: 0, kind: input, shape index: {}]
  %s1 = inlined_call_operand.vmem [shape: f32[1,256], index: 1, kind: output, shape index: {}]
  %s2 = sld [smem:[#allocation0]]
  $region14: #{pallas_log.1} parent=0
    _
  %s4 = ssub.s32 1, %s2
  %s5 = scalar_select 0, %s4, %s2
  // Predicated region
  $region2: #{pallas_log.1} parent=0 // pred_check
    _
  $region3: #{pallas_log.1} parent=0 // pred_check_branch
    %7 = sbr.rel (0) target = $region5
  $region4: #{pallas_log.1} parent=0 // pred_region
    _
  $region5: #{pallas_log.1} parent=0 // pred_fallthru
    _
  %v8 = vld [vmem:[%s0] sm:$0x3]
  %v9 = vlog2.pop %v8
  %v10 = vmul.f32 %v9, 0.6931472
  %v11 = vlaneseq
  %vm12 = vcmp.ge.s32.totalorder %v11, 0
  %vm13 = vcmp.lt.s32.totalorder %v11, 256
  %vm14 = vmand %vm12, %vm13
  %15 = vst.msk [vmem:[%s1] sm:$0x3] %vm14, %v10
  // Predicated region
  $region6: #{pallas_log.1} parent=0 // pred_check
    _
  $region7: #{pallas_log.1} parent=0 // pred_check_branch
    %17 = sbr.rel (0) target = $region9
  $region8: #{pallas_log.1} parent=0 // pred_region
    _
  $region9: #{pallas_log.1} parent=0 // pred_fallthru
    _
  // Predicated region
  $region10: #{pallas_log.1} parent=0 // pred_check
    _
  $region11: #{pallas_log.1} parent=0 // pred_check_branch
    %19 = sbr.rel (0) target = $region13
  $region12: #{pallas_log.1} parent=0 // pred_region
    _
  $region13: #{pallas_log.1} parent=0 // pred_fallthru
    _

</llo_original>
